<compile_context>
chip_gen: v7x
topology: tpu7x:2x2x1
jax: 0.10.0
libtpu: 0.0.40
codegen_flags: <defaults>
</compile_context>

<pallas_src>
import math
import numbers

import jax
import jax.numpy as jnp
import numpy as np
from jax import lax
from jax.experimental import pallas as pl
from jax.experimental.pallas import tpu as pltpu


def make_gaussian_weight(channels, kernel_size, sigma, dim=2):
    """Reproduces the PyTorch __init__ weight construction exactly (incl. the
    exp(-((x-mean)/(2*std))**2) form). Returns numpy (C, k0, k1) float32."""
    if isinstance(kernel_size, numbers.Number):
        kernel_size = [int(kernel_size)] * dim
    if isinstance(sigma, numbers.Number):
        sigma = [float(sigma)] * dim
    assert dim == 2, "this script implements the default dim=2 (conv2d) path"
    mgrids = np.meshgrid(
        *[np.arange(s, dtype=np.float32) for s in kernel_size], indexing="ij"
    )
    kernel = np.ones((), np.float32)
    for size, std, mgrid in zip(kernel_size, sigma, mgrids):
        mean = (size - 1) / 2
        kernel = kernel * (
            1.0 / (std * math.sqrt(2.0 * math.pi))
            * np.exp(-(((mgrid - mean) / (2.0 * std)) ** 2))
        )
    kernel = kernel / np.sum(kernel)
    # view(1,1,k,k).repeat(channels,1,1,1) -> per-channel copy of same kernel
    return np.tile(kernel[None], (channels, 1, 1)).astype(np.float32)


def _separable_taps(weight):
    """The module's 2D kernel is the outer product of normalized 1D kernels and
    is identical across channels; recover the 1D factors as python floats."""
    w2d = np.asarray(weight[0], dtype=np.float64)
    kh = [float(v) for v in w2d.sum(axis=1)]  # taps along H (sublane axis)
    kw = [float(v) for v in w2d.sum(axis=0)]  # taps along W (lane axis)
    return kh, kw


def _make_blur_kernel(kh, kw, H, Wp):
    """Kernel body for a (P, H, Wp) block (Wp = G*W packed lane slab)."""
    k0, k1 = len(kh), len(kw)

    def kernel(x_ref, o_ref):
        x = x_ref[...].astype(jnp.float32)

        # Pass 1: blur along the packed lane axis. roll by -j brings column
        # L+j to L; for valid columns (w < Wo) this stays inside the same
        # packed plane, the contaminated tail columns are cropped by the
        # wrapper. Static python unroll is fine for small k (k=3 here).
        acc = x * kw[0]
        for j in range(1, k1):
            acc = acc + pltpu.roll(x, shift=Wp - j, axis=2) * kw[j]

        # Pass 2: blur along H (sublane axis); wrapped rows are cropped too.
        out = acc * kh[0]
        for i in range(1, k0):
            out = out + pltpu.roll(acc, shift=H - i, axis=1) * kh[i]

        # Single full-block, lane-dense (multiple of 128) unmasked store.
        o_ref[...] = out.astype(o_ref.dtype)

    return kernel


def gaussian_smoothing(x, weight):
    """Depthwise 'valid' conv2d with the module's gaussian weight.
    x: (N, C, H, W), weight: (C, k0, k1) -> (N, C, H-k0+1, W-k1+1)."""
    N, C, H, W = x.shape
    Cw, k0, k1 = weight.shape
    assert Cw == C
    Ho, Wo = H - k0 + 1, W - k1 + 1
    kh, kw = _separable_taps(weight)

    NC = N * C

    # Lane packing factor: put G whole planes side by side along the lane axis
    # so the last block dim is exactly 128 (full vreg lane utilization,
    # unmasked stores). Fall back to G=1 when W doesn't tile 128 cleanly.
    if W < 128 and 128 % W == 0:
        G = 128 // W
    else:
        G = 1
    Wp = G * W

    # Choose the slab-block size P from a VMEM budget conservative for v7x
    # (64 MiB physical / 32 MiB scoped): ~8 slab-sized f32 buffers per slab in
    # flight (double-buffered in/out tiles + f32 temporaries).
    NCg = -(-NC // G)
    slab_bytes = H * Wp * max(4, int(np.dtype(x.dtype).itemsize))
    budget = 16 * 1024 * 1024
    cap = max(1, budget // (8 * slab_bytes))
    P = min(NCg, cap)
    NCg_pad = -(-NCg // P) * P
    planes_pad = NCg_pad * G

    # Wrapper-side layout plumbing: collapse (N, C) -> planes, zero-pad to a
    # whole number of slabs/blocks, pack G planes per 128-wide lane slab.
    x_planes = x.reshape(NC, H, W)
    if planes_pad != NC:
        x_planes = jnp.pad(x_planes, ((0, planes_pad - NC), (0, 0), (0, 0)))
    x_packed = (
        x_planes.reshape(NCg_pad, G, H, W)
        .transpose(0, 2, 1, 3)
        .reshape(NCg_pad, H, Wp)
    )

    block_bytes = P * slab_bytes
    vmem_limit = int(min(max(8 * block_bytes, 32 * 1024 * 1024),
                         64 * 1024 * 1024))

    out_packed = pl.pallas_call(
        _make_blur_kernel(kh, kw, H, Wp),
        out_shape=jax.ShapeDtypeStruct((NCg_pad, H, Wp), x.dtype),
        grid_spec=pltpu.PrefetchScalarGridSpec(
            num_scalar_prefetch=0,
            grid=(NCg_pad // P,),
            in_specs=[pl.BlockSpec((P, H, Wp), lambda b: (b, 0, 0))],
            out_specs=pl.BlockSpec((P, H, Wp), lambda b: (b, 0, 0)),
        ),
        compiler_params=pltpu.CompilerParams(
            dimension_semantics=("parallel",),
            vmem_limit_bytes=vmem_limit,
        ),
    )(x_packed)

    # Unpack lane slabs, crop the valid window, restore NCHW (outside kernel).
    out_planes = (
        out_packed.reshape(NCg_pad, H, G, W)
        .transpose(0, 2, 1, 3)
        .reshape(planes_pad, H, W)
    )
    return out_planes[:NC, :Ho, :Wo].reshape(N, C, Ho, Wo)


def reference_conv(x, weight):
    """Pure-JAX reference: depthwise conv2d, valid padding, groups=C."""
    C = x.shape[1]
    w = jnp.asarray(weight)[:, None, :, :]  # (C, 1, k, k) depthwise weight
    return lax.conv_general_dilated(
        x, w,
        window_strides=(1, 1),
        padding="VALID",
        dimension_numbers=("NCHW", "OIHW", "NCHW"),
        feature_group_count=C,
        precision=lax.Precision.HIGHEST,
    )


if __name__ == "__main__":
    # Module config (synthetic, deterministic): channels=4, kernel_size=3,
    # sigma=0.5, dim=2.
    channels, kernel_size, sigma = 4, 3, 0.5
    weight = make_gaussian_weight(channels, kernel_size, sigma, dim=2)

    key = jax.random.PRNGKey(0)
    x = jax.random.normal(key, (2, channels, 16, 16), dtype=jnp.float32)

    out = jax.block_until_ready(gaussian_smoothing(x, weight))
    ref = jax.block_until_ready(reference_conv(x, weight))

    assert out.shape == (2, channels, 14, 14), out.shape
    np.testing.assert_allclose(np.asarray(out), np.asarray(ref),
                               rtol=1e-5, atol=1e-5)

    print("KERNEL_OK")
</pallas_src>

<mosaic_0001>
module attributes {stable_mosaic.version = 11 : i64} {
  func.func @kernel(%arg0: i32, %arg1: memref<1x16x128xf32, #tpu.memory_space<vmem>>, %arg2: memref<1x16x128xf32, #tpu.memory_space<vmem>>) attributes {dimension_semantics = [#tpu.dimension_semantics<parallel>], iteration_bounds = array<i64: 1>, scalar_prefetch = 0 : i64, scratch_operands = 0 : i64, tpu.core_type = #tpu.core_type<tc>, window_params = [{transform_indices = @transform_0, window_bounds = array<i64: 1, 16, 128>}, {transform_indices = @transform_1, window_bounds = array<i64: 1, 16, 128>}]} {
    %c0 = arith.constant 0 : index
    %c0_0 = arith.constant 0 : index
    %c0_1 = arith.constant 0 : index
    %0 = vector.load %arg1[%c0, %c0_0, %c0_1] : memref<1x16x128xf32, #tpu.memory_space<vmem>>, vector<1x16x128xf32>
    %cst = arith.constant 0.211941555 : f32
    %1 = vector.broadcast %cst : f32 to vector<1x16x128xf32>
    %2 = arith.mulf %0, %1 : vector<1x16x128xf32>
    %c127_i32 = arith.constant 127 : i32
    %3 = tpu.dynamic_rotate %0 by %c127_i32 dim 2 : vector<1x16x128xf32>, i32 -> vector<1x16x128xf32>
    %cst_2 = arith.constant 0.57611692 : f32
    %4 = vector.broadcast %cst_2 : f32 to vector<1x16x128xf32>
    %5 = arith.mulf %3, %4 : vector<1x16x128xf32>
    %6 = arith.addf %2, %5 : vector<1x16x128xf32>
    %c126_i32 = arith.constant 126 : i32
    %7 = tpu.dynamic_rotate %0 by %c126_i32 dim 2 : vector<1x16x128xf32>, i32 -> vector<1x16x128xf32>
    %cst_3 = arith.constant 0.211941555 : f32
    %8 = vector.broadcast %cst_3 : f32 to vector<1x16x128xf32>
    %9 = arith.mulf %7, %8 : vector<1x16x128xf32>
    %10 = arith.addf %6, %9 : vector<1x16x128xf32>
    %cst_4 = arith.constant 0.211941555 : f32
    %11 = vector.broadcast %cst_4 : f32 to vector<1x16x128xf32>
    %12 = arith.mulf %10, %11 : vector<1x16x128xf32>
    %c15_i32 = arith.constant 15 : i32
    %13 = tpu.dynamic_rotate %10 by %c15_i32 dim 1 : vector<1x16x128xf32>, i32 -> vector<1x16x128xf32>
    %cst_5 = arith.constant 0.57611692 : f32
    %14 = vector.broadcast %cst_5 : f32 to vector<1x16x128xf32>
    %15 = arith.mulf %13, %14 : vector<1x16x128xf32>
    %16 = arith.addf %12, %15 : vector<1x16x128xf32>
    %c14_i32 = arith.constant 14 : i32
    %17 = tpu.dynamic_rotate %10 by %c14_i32 dim 1 : vector<1x16x128xf32>, i32 -> vector<1x16x128xf32>
    %cst_6 = arith.constant 0.211941555 : f32
    %18 = vector.broadcast %cst_6 : f32 to vector<1x16x128xf32>
    %19 = arith.mulf %17, %18 : vector<1x16x128xf32>
    %20 = arith.addf %16, %19 : vector<1x16x128xf32>
    %c0_7 = arith.constant 0 : index
    %c0_8 = arith.constant 0 : index
    %c0_9 = arith.constant 0 : index
    %21 = vector.load %arg2[%c0_7, %c0_8, %c0_9] : memref<1x16x128xf32, #tpu.memory_space<vmem>>, vector<1x16x128xf32>
    tpu.vector_store %arg2[%c0_7, %c0_8, %c0_9], %20 {strides = array<i32>} : memref<1x16x128xf32, #tpu.memory_space<vmem>>, vector<1x16x128xf32>,
    return
  }
  func.func @transform_0(%arg0: i32) -> (i32, i32, i32) {
    %c0_i32 = arith.constant 0 : i32
    %c0_i32_0 = arith.constant 0 : i32
    %c0_i32_1 = arith.constant 0 : i32
    return %arg0, %c0_i32, %c0_i32_0 : i32, i32, i32
  }
  func.func @transform_1(%arg0: i32) -> (i32, i32, i32) {
    %c0_i32 = arith.constant 0 : i32
    %c0_i32_0 = arith.constant 0 : i32
    %c0_i32_1 = arith.constant 0 : i32
    return %arg0, %c0_i32, %c0_i32_0 : i32, i32, i32
  }
}

</mosaic_0001>

<llo_original>
// kernel: tpu_custom_call.1
$region0: #{tpu_custom_call.1}
  #allocation0 [shape = 'u32[]', space=smem, size = 0x4, offset = 0x4, fixed_abs, tag = 'smem constant byte address 0x4 - core index']
  #allocation1 [shape = 'u32[144,128]{1,0:T(1,128)}', space=vmem, size = 0x12000, scoped, tag = 'internal scratch']
  %s0 = inlined_call_operand.hbm [shape: f32[1,16,128], index: 0, kind: input, shape index: {}]
  %s1 = inlined_call_operand.hbm [shape: f32[1,16,128], index: 1, kind: output, shape index: {}]
  %s2 = sld [smem:[#allocation0]]
  $region18: #{tpu_custom_call.1} parent=0
    _
  %s4 = ssub.s32 1, %s2
  %s5 = scalar_select 0, %s4, %s2
  $region1: #{tpu_custom_call.1} parent=0
    #allocation2 [shape = 'u8[8192]{0}', space=vmem, size = 0x2000, scoped, tag = 'input window, operand 0, single buffered']
    #allocation3 [shape = 's32[1]{0}', space=sflag, size = 0x4, scoped, tag = 'scoped memory for tpu_custom_call.1']
    #allocation4 [shape = 's32[1]{0}', space=sflag, size = 0x4, scoped, tag = 'scoped memory for tpu_custom_call.1']
    #allocation5 [shape = 'u8[8192]{0}', space=vmem, size = 0x2000, scoped, tag = 'output window, operand 0, single buffered']
    %6 = vsyncpa [#allocation3], 0
    %7 = vsyncpa [#allocation4], 0
    // Predicated region
    $region2: #{tpu_custom_call.1} parent=1 // pred_check
      _
    $region3: #{tpu_custom_call.1} parent=1 // pred_check_branch
      %9 = sbr.rel (0) target = $region5
    $region4: #{tpu_custom_call.1} parent=1 // pred_region
      %s11 = ssub.s32 256, 256
      %12 = vsyncadd [#allocation3], %s11
      %s13 = sshll.u32 [#allocation2], 4
      %s14 = int_to_ptr.vmem [resolvable:$true] %s13
      %19 = dma.hbm_to_vmem [thread:$0]  %s0, 256, %s14, [#allocation3], 128, 128, 8
    $region5: #{tpu_custom_call.1} parent=1 // pred_fallthru
      _
    // Predicated region
    $region6: #{tpu_custom_call.1} parent=1 // pred_check
      _
    $region7: #{tpu_custom_call.1} parent=1 // pred_check_branch
      %21 = sbr.rel (0) target = $region9
    $region8: #{tpu_custom_call.1} parent=1 // pred_region
      %22 = dma.done [#allocation3], 256
    $region9: #{tpu_custom_call.1} parent=1 // pred_fallthru
      _
    %v23 = vld [vmem:[#allocation2] sm:$0xff]
    %v24 = vld [vmem:[#allocation2 + $0x8] sm:$0xff]
    %v25 = vmul.f32 %v23, 0.21194156
    %v26 = vmul.f32 %v24, 0.21194156
    %27 = vrot.lane.b32.xlu0 %v23, 127
    %v28 = vpop.permute.xlu0 %27
    %29 = vrot.lane.b32.xlu0 %v24, 127
    %v30 = vpop.permute.xlu0 %29
    %v31 = vmul.f32 %v28, 0.5761169
    %v32 = vmul.f32 %v30, 0.5761169
    %v33 = vadd.f32 %v25, %v31
    %v34 = vadd.f32 %v26, %v32
    %35 = vrot.lane.b32.xlu0 %v23, 126
    %v36 = vpop.permute.xlu0 %35
    %37 = vrot.lane.b32.xlu0 %v24, 126
    %v38 = vpop.permute.xlu0 %37
    %v39 = vmul.f32 %v36, 0.21194156
    %v40 = vmul.f32 %v38, 0.21194156
    %v41 = vadd.f32 %v33, %v39
    %v42 = vadd.f32 %v34, %v40
    %v43 = vmul.f32 %v41, 0.21194156
    %v44 = vmul.f32 %v42, 0.21194156
    %v45 = vrot.slane %v41, 1
    %v46 = vrot.slane %v42, 1
    %v47 = vlaneseq
    %v48 = vshrl.u32 %v47, 7
    %vm49 = vcmp.lt.s32.totalorder %v48, 7
    %v50 = vsel %vm49, %v45, %v46
    %v51 = vsel %vm49, %v46, %v45
    %v52 = vmul.f32 %v50, 0.5761169
    %v53 = vmul.f32 %v51, 0.5761169
    %v54 = vadd.f32 %v43, %v52
    %v55 = vadd.f32 %v44, %v53
    %v56 = vrot.slane %v41, 2
    %v57 = vrot.slane %v42, 2
    %vm58 = vcmp.lt.s32.totalorder %v48, 6
    %v59 = vsel %vm58, %v56, %v57
    %v60 = vsel %vm58, %v57, %v56
    %v61 = vmul.f32 %v59, 0.21194156
    %v62 = vmul.f32 %v60, 0.21194156
    %v63 = vadd.f32 %v54, %v61
    %v64 = vadd.f32 %v55, %v62
    %65 = vst [vmem:[#allocation5] sm:$0xff] %v63
    %66 = vst [vmem:[#allocation5 + $0x8] sm:$0xff] %v64
    // Predicated region
    $region10: #{tpu_custom_call.1} parent=1 // pred_check
      _
    $region11: #{tpu_custom_call.1} parent=1 // pred_check_branch
      %68 = sbr.rel (0) target = $region13
    $region12: #{tpu_custom_call.1} parent=1 // pred_region
      %s70 = ssub.s32 256, 256
      %71 = vsyncadd [#allocation4], %s70
      %s72 = sshll.u32 [#allocation5], 4
      %s73 = int_to_ptr.vmem [resolvable:$true] %s72
      %78 = dma.vmem_to_hbm [thread:$0]  %s73, 256, %s1, [#allocation4], 128, 128, 8
    $region13: #{tpu_custom_call.1} parent=1 // pred_fallthru
      _
    // Predicated region
    $region14: #{tpu_custom_call.1} parent=1 // pred_check
      _
    $region15: #{tpu_custom_call.1} parent=1 // pred_check_branch
      %80 = sbr.rel (0) target = $region17
    $region16: #{tpu_custom_call.1} parent=1 // pred_region
      %81 = dma.done [#allocation4], 256
    $region17: #{tpu_custom_call.1} parent=1 // pred_fallthru
      _
    %82 = vsyncpa [#allocation3], 1
    %83 = vsyncpa [#allocation4], 1

</llo_original>
